<compile_context>
chip_gen: v7x
topology: tpu7x:2x2x1
jax: 0.10.0
libtpu: 0.0.40
codegen_flags: <defaults>
</compile_context>

<pallas_src>
import functools

import jax
import jax.numpy as jnp
from jax.experimental import pallas as pl
from jax.experimental.pallas import tpu as pltpu


def _patch_gather_kernel(idx_ref, x_ref, out_ref, onehot_ref, *, precision):
    """One (batch, d-tile) step: out = onehot(idx) @ x on the MXU.

    idx_ref    : VMEM (out_len, 1) int32 — token indices to keep (prefix prepended).
    x_ref      : VMEM (S, tile_d)        — all tokens of this batch element, one D tile.
    out_ref    : VMEM (out_len, tile_d)  — gathered tokens.
    onehot_ref : VMEM (out_len, S)       — per-batch one-hot, built once at d==0.
    """
    # Build the selection matrix only on the first D tile of each batch element;
    # it is pure VPU work that does not depend on the D tile.
    @pl.when(pl.program_id(1) == 0)
    def _build_onehot():
        out_len, s = onehot_ref.shape
        token_ids = jax.lax.broadcasted_iota(jnp.int32, (out_len, s), 1)
        onehot_ref[...] = (token_ids == idx_ref[...]).astype(onehot_ref.dtype)

    # Canonical (M,K)x(K,N) MXU matmul; exactly one nonzero per output row, so the
    # result reproduces the selected input rows (exactly, given HIGHEST for f32).
    gathered = jnp.dot(
        onehot_ref[...],
        x_ref[...],
        preferred_element_type=jnp.float32,
        precision=precision,
    )
    out_ref[...] = gathered.astype(out_ref.dtype)


def _vmem_capacity_bytes():
    try:
        info = pltpu.get_tpu_info()
    except Exception:
        return None
    for attr in ("vmem_capacity_bytes", "vmem_size_bytes", "vmem_bytes"):
        v = getattr(info, attr, None)
        if isinstance(v, int) and v > 0:
            return v
    return None


def _round_up(x, m):
    return -(-x // m) * m


def _select_tiling(d, s, out_len, itemsize):
    """Pick (tile_d, vmem_limit_bytes).

    tile_d is the largest lane-dense (128-multiple) tile whose double-buffered
    in/out blocks + one-hot scratch + f32 accumulator fit the generation-aware
    VMEM budget; D is tiled with cdiv so no divisibility is required.  When D is
    small enough, a single full-D block is used (legal even if D % 128 != 0).
    """
    cap = _vmem_capacity_bytes()
    if cap is None:
        cap = 64 << 20  # conservative: v7x per-TC physical VMEM
    # v5e/v6e (128 MiB physical) -> 64 MiB scoped; v7x (64 MiB physical) -> 32 MiB.
    vmem_limit = int(min(max(cap // 2, 32 << 20), 64 << 20))
    budget = int(vmem_limit * 0.75)  # headroom for Mosaic internals / spills

    s_pad = _round_up(s, 8)
    s_lane = _round_up(s, 128)
    o_pad = _round_up(out_len, 8)

    def need(tile):
        t_pad = _round_up(tile, 128)
        x_blk = s_pad * t_pad * itemsize          # input tile
        o_blk = o_pad * t_pad * itemsize          # output tile
        idx_blk = o_pad * 128 * 4                 # tiny index column
        onehot = o_pad * s_lane * itemsize        # persistent scratch
        acc = o_pad * t_pad * 4                   # f32 MXU result
        return 2 * (x_blk + o_blk + idx_blk) + onehot + acc

    tile = 128
    for cand in (1024, 512, 256, 128):
        if need(cand) <= budget:
            tile = cand
            break
    if d <= tile:
        tile = d  # single full-D block: no padding, always layout-legal
    return tile, vmem_limit


def _sample_keep_indices(key, batch, num_tokens, num_keep):
    """Equivalent of torch.randn(batch, num_tokens).topk(num_keep).indices."""
    rand = jax.random.normal(key, (batch, num_tokens), dtype=jnp.float32)
    _, idx = jax.lax.top_k(rand, num_keep)
    return idx.astype(jnp.int32)


def patch_dropout(x, key, *, prob, exclude_first_token=True, training=True):
    """JAX/Pallas equivalent of PatchDropout.forward."""
    assert 0 <= prob < 1.0
    if (not training) or prob == 0.0:
        return x

    B, S, D = x.shape
    n_prefix = 1 if exclude_first_token else 0
    num_tokens = S - n_prefix
    keep_prob = 1.0 - prob
    num_keep = max(1, int(num_tokens * keep_prob))
    out_len = n_prefix + num_keep

    # Glue: random top-k selection; fold the cls/prefix passthrough into the gather.
    patch_idx = _sample_keep_indices(key, B, num_tokens, num_keep) + n_prefix
    if n_prefix:
        prefix = jnp.broadcast_to(
            jnp.arange(n_prefix, dtype=jnp.int32)[None, :], (B, n_prefix)
        )
        gather_idx = jnp.concatenate([prefix, patch_idx], axis=1)
    else:
        gather_idx = patch_idx
    # MXU-natural orientation: an (out_len, 1) index column broadcasts along lanes.
    gather_idx = gather_idx.reshape(B, out_len, 1)

    itemsize = jnp.dtype(x.dtype).itemsize
    tile_d, vmem_limit = _select_tiling(D, S, out_len, itemsize)
    grid = (B, pl.cdiv(D, tile_d))

    precision = (
        jax.lax.Precision.HIGHEST
        if x.dtype == jnp.float32
        else jax.lax.Precision.DEFAULT
    )
    kernel = functools.partial(_patch_gather_kernel, precision=precision)

    cost = pl.CostEstimate(
        flops=2 * B * S * out_len * D,
        bytes_accessed=B * (S * D + out_len * D) * itemsize + B * out_len * 4,
        transcendentals=0,
    )

    out = pl.pallas_call(
        kernel,
        out_shape=jax.ShapeDtypeStruct((B, out_len, D), x.dtype),
        grid=grid,
        in_specs=[
            pl.BlockSpec((None, out_len, 1), lambda b, d: (b, 0, 0)),
            pl.BlockSpec((None, S, tile_d), lambda b, d: (b, 0, d)),
        ],
        out_specs=pl.BlockSpec((None, out_len, tile_d), lambda b, d: (b, 0, d)),
        scratch_shapes=[pltpu.VMEM((out_len, S), x.dtype)],
        compiler_params=pltpu.CompilerParams(
            dimension_semantics=("parallel", "arbitrary"),
            vmem_limit_bytes=vmem_limit,
        ),
        cost_estimate=cost,
    )(gather_idx, x)
    return out


if __name__ == "__main__":
    # Small shapes: batch=2, tokens = 1 cls + 8 patches, hidden=32.
    B, N_PATCH, D = 2, 8, 32
    S = 1 + N_PATCH
    PROB = 0.5  # keep = max(1, int(8 * 0.5)) = 4 patches -> out_len = 5

    key = jax.random.PRNGKey(0)
    kx, kdrop = jax.random.split(key)
    x = jax.random.normal(kx, (B, S, D), dtype=jnp.float32)

    out = patch_dropout(x, kdrop, prob=PROB, exclude_first_token=True, training=True)
    out = jax.block_until_ready(out)

    # Pure-JAX reference: reconstruct the same indices (deterministic in kdrop).
    num_keep = max(1, int(N_PATCH * (1.0 - PROB)))
    patch_idx = _sample_keep_indices(kdrop, B, N_PATCH, num_keep) + 1
    gidx = jnp.concatenate([jnp.zeros((B, 1), jnp.int32), patch_idx], axis=1)
    ref = jnp.take_along_axis(x, gidx[:, :, None], axis=1)

    assert out.shape == (B, 1 + num_keep, D), out.shape
    assert jnp.allclose(out, ref, rtol=1e-6, atol=1e-6), "Pallas gather mismatch vs reference"

    # Eval mode / prob == 0 is identity, with the same return type as training.
    ident = patch_dropout(x, kdrop, prob=PROB, training=False)
    assert jnp.array_equal(ident, x)

    print("KERNEL_OK")
</pallas_src>

<mosaic_0001>
module attributes {stable_mosaic.version = 11 : i64} {
  func.func @_patch_gather_kernel(%arg0: i32, %arg1: i32, %arg2: memref<1x5x1xi32, #tpu.memory_space<vmem>>, %arg3: memref<1x9x32xf32, #tpu.memory_space<vmem>>, %arg4: memref<1x5x32xf32, #tpu.memory_space<vmem>>, %arg5: memref<5x9xf32, #tpu.memory_space<vmem>>) attributes {dimension_semantics = [#tpu.dimension_semantics<parallel>, #tpu.dimension_semantics<arbitrary>], iteration_bounds = array<i64: 2, 1>, scalar_prefetch = 0 : i64, scratch_operands = 1 : i64, tpu.core_type = #tpu.core_type<tc>, window_params = [{transform_indices = @transform_0, window_bounds = array<i64: 1, 5, 1>}, {transform_indices = @transform_1, window_bounds = array<i64: 1, 9, 32>}, {transform_indices = @transform_2, window_bounds = array<i64: 1, 5, 32>}]} {
    %c0_i32 = arith.constant 0 : i32
    %0 = arith.cmpi eq, %arg1, %c0_i32 : i32
    %1 = arith.extui %0 : i1 to i32
    %c0_i32_0 = arith.constant 0 : i32
    %2 = arith.cmpi ne, %1, %c0_i32_0 : i32
    scf.if %2 {
      %10 = tpu.iota {dimensions = array<i32: 1>} : vector<5x9xi32>
      %c0_8 = arith.constant 0 : index
      %c0_9 = arith.constant 0 : index
      %c0_10 = arith.constant 0 : index
      %11 = vector.load %arg2[%c0_8, %c0_9, %c0_10] : memref<1x5x1xi32, #tpu.memory_space<vmem>>, vector<1x5x1xi32>
      %12 = vector.shape_cast %11 : vector<1x5x1xi32> to vector<5x1xi32>
      %13 = vector.broadcast %12 : vector<5x1xi32> to vector<5x9xi32>
      %14 = arith.cmpi eq, %10, %13 : vector<5x9xi32>
      %15 = arith.extui %14 : vector<5x9xi1> to vector<5x9xi32>
      %16 = arith.sitofp %15 : vector<5x9xi32> to vector<5x9xf32>
      %c0_11 = arith.constant 0 : index
      %c0_12 = arith.constant 0 : index
      %17 = vector.load %arg5[%c0_11, %c0_12] : memref<5x9xf32, #tpu.memory_space<vmem>>, vector<5x9xf32>
      tpu.vector_store %arg5[%c0_11, %c0_12], %16 {strides = array<i32>} : memref<5x9xf32, #tpu.memory_space<vmem>>, vector<5x9xf32>,
    } else {
    }
    %c0 = arith.constant 0 : index
    %c0_1 = arith.constant 0 : index
    %3 = vector.load %arg5[%c0, %c0_1] : memref<5x9xf32, #tpu.memory_space<vmem>>, vector<5x9xf32>
    %c0_2 = arith.constant 0 : index
    %c0_3 = arith.constant 0 : index
    %c0_4 = arith.constant 0 : index
    %4 = vector.load %arg3[%c0_2, %c0_3, %c0_4] : memref<1x9x32xf32, #tpu.memory_space<vmem>>, vector<1x9x32xf32>
    %5 = vector.shape_cast %4 : vector<1x9x32xf32> to vector<9x32xf32>
    %cst = arith.constant dense<0.000000e+00> : vector<5x32xf32>
    %6 = tpu.matmul %3, %5, %cst {dimension_numbers = #tpu.dot_dimension_numbers<[1], [0], [0], [1], [0, 0, 1, 1], [], []>, precision = #tpu.contract_precision<fp32>} : vector<5x9xf32>, vector<9x32xf32>, vector<5x32xf32> -> vector<5x32xf32>
    %c0_5 = arith.constant 0 : index
    %c0_6 = arith.constant 0 : index
    %c0_7 = arith.constant 0 : index
    %7 = vector.load %arg4[%c0_5, %c0_6, %c0_7] : memref<1x5x32xf32, #tpu.memory_space<vmem>>, vector<1x5x32xf32>
    %8 = vector.shape_cast %7 : vector<1x5x32xf32> to vector<5x32xf32>
    %9 = vector.shape_cast %6 : vector<5x32xf32> to vector<1x5x32xf32>
    tpu.vector_store %arg4[%c0_5, %c0_6, %c0_7], %9 {strides = array<i32>} : memref<1x5x32xf32, #tpu.memory_space<vmem>>, vector<1x5x32xf32>,
    return
  }
  func.func @transform_0(%arg0: i32, %arg1: i32) -> (i32, i32, i32) {
    %c0_i32 = arith.constant 0 : i32
    %c0_i32_0 = arith.constant 0 : i32
    %c0_i32_1 = arith.constant 0 : i32
    return %arg0, %c0_i32, %c0_i32_0 : i32, i32, i32
  }
  func.func @transform_1(%arg0: i32, %arg1: i32) -> (i32, i32, i32) {
    %c0_i32 = arith.constant 0 : i32
    %c0_i32_0 = arith.constant 0 : i32
    return %arg0, %c0_i32, %arg1 : i32, i32, i32
  }
  func.func @transform_2(%arg0: i32, %arg1: i32) -> (i32, i32, i32) {
    %c0_i32 = arith.constant 0 : i32
    %c0_i32_0 = arith.constant 0 : i32
    return %arg0, %c0_i32, %arg1 : i32, i32, i32
  }
}

</mosaic_0001>

<llo_original>
// kernel: tpu_custom_call.1
$region0: #{tpu_custom_call.1}
  #allocation0 [shape = 'u32[]', space=smem, size = 0x4, offset = 0x4, fixed_abs, tag = 'smem constant byte address 0x4 - core index']
  #allocation1 [shape = 'u32[144,128]{1,0:T(1,128)}', space=vmem, size = 0x12000, scoped, tag = 'internal scratch']
  #allocation2 [shape = 'f32[5,9]{1,0:T(8,128)}', space=vmem, size = 0x1000, scoped, tag = 'scratch operand']
  %s0 = inlined_call_operand.vmem [shape: s32[2,5,1], index: 0, kind: input, shape index: {}]
  %s1 = inlined_call_operand.vmem [shape: f32[2,9,32], index: 1, kind: input, shape index: {}]
  %s2 = inlined_call_operand.vmem [shape: f32[2,5,32], index: 2, kind: output, shape index: {}]
  %s3 = sld [smem:[#allocation0]]
  $region45: #{tpu_custom_call.1} parent=0
    _
  %s5 = ssub.s32 1, %s3
  %s6 = scalar_select 0, %s5, %s3
  loop: start=0, step=1, limit=4
  $region2: #{tpu_custom_call.1} parent=0 // loop_pre_header
    _
  $region3: #{tpu_custom_call.1} parent=0 // loop_header
    %s8 = sphi 0, %s12
    %p9 = scmp.ge.s32.totalorder %s8, 4
    %s15 = sphi 0, %s27
    %s16 = sphi 0, %s23
    %s17 = sphi 0, %s15
    %s18 = sphi 0, %s16
    %s19 = sphi 0, %s17
    %s20 = sphi 0, %s18
    %s30 = sphi 0, %s32
    %s33 = sphi 0, %s30
    %s34 = sphi 0, %s33
    %s50 = sphi 0, %s34
    %s58 = sphi 0, %s60
    %s61 = sphi 0, %s58
    %s62 = sphi 0, %s61
    %s78 = sphi 0, %s62
    %s86 = sphi 0, %s88
    %s89 = sphi 0, %s86
    %s90 = sphi 0, %s89
    %s106 = sphi 0, %s90
  $region4: #{tpu_custom_call.1} parent=0 // loop_header_branch
    %11 = sbr.rel (%p9) target = $region8
  $region5: #{tpu_custom_call.1} parent=0 // loop_body
    %s13 = ssub.s32 %s8, 1
    %s14 = ssub.s32 %s8, 2
    %s21 = sadd.s32 1, %s16
    %p22 = scmp.ge.s32.totalorder %s21, 1
    %s23 = scalar_select %p22, 0, %s21
    %s24 = sadd.s32 1, %s15
    %s25 = scalar_select %p22, %s24, %s15
    %p26 = scmp.ge.s32.totalorder %s25, 2
    %s27 = scalar_select %p26, 0, %s25
    %s28 = ssub.s32 %s15, %s27
    %p29 = scmp.eq.s32.totalorder %s28, 0
    %s31 = sadd.s32 %s30, 1
    %s32 = scalar_select %p29, %s30, %s31
    %p35 = pneg %p29
    %p36 = scmp.eq.s32.totalorder %s8, 1
    %p37 = por %p35, %p36
    %p38 = scmp.ne.s32.totalorder %s30, %s33
    %p39 = scmp.eq.s32.totalorder %s8, 0
    %p40 = por %p38, %p39
    %p41 = scmp.ne.s32.totalorder %s30, %s33
    %p42 = scmp.eq.s32.totalorder %s13, 1
    %p43 = por %p41, %p42
    %p44 = scmp.ne.s32.totalorder %s33, %s34
    %p45 = scmp.eq.s32.totalorder %s13, 0
    %p46 = por %p44, %p45
    %p47 = scmp.ne.s32.totalorder %s33, %s34
    %p48 = scmp.eq.s32.totalorder %s14, 1
    %p49 = por %p47, %p48
    %p51 = scmp.ne.s32.totalorder %s34, %s50
    %p52 = scmp.eq.s32.totalorder %s14, 0
    %p53 = por %p51, %p52
    %s54 = ssub.s32 %s15, %s27
    %s55 = ssub.s32 %s16, %s23
    %s56 = sor.u32 %s54, %s55
    %p57 = scmp.eq.s32.totalorder %s56, 0
    %s59 = sadd.s32 %s58, 1
    %s60 = scalar_select %p57, %s58, %s59
    %p63 = pneg %p57
    %p64 = scmp.eq.s32.totalorder %s8, 1
    %p65 = por %p63, %p64
    %p66 = scmp.ne.s32.totalorder %s58, %s61
    %p67 = scmp.eq.s32.totalorder %s8, 0
    %p68 = por %p66, %p67
    %p69 = scmp.ne.s32.totalorder %s58, %s61
    %p70 = scmp.eq.s32.totalorder %s13, 1
    %p71 = por %p69, %p70
    %p72 = scmp.ne.s32.totalorder %s61, %s62
    %p73 = scmp.eq.s32.totalorder %s13, 0
    %p74 = por %p72, %p73
    %p75 = scmp.ne.s32.totalorder %s61, %s62
    %p76 = scmp.eq.s32.totalorder %s14, 1
    %p77 = por %p75, %p76
    %p79 = scmp.ne.s32.totalorder %s62, %s78
    %p80 = scmp.eq.s32.totalorder %s14, 0
    %p81 = por %p79, %p80
    %s82 = ssub.s32 %s15, %s27
    %s83 = ssub.s32 %s16, %s23
    %s84 = sor.u32 %s82, %s83
    %p85 = scmp.eq.s32.totalorder %s84, 0
    %s87 = sadd.s32 %s86, 1
    %s88 = scalar_select %p85, %s86, %s87
    %p91 = pneg %p85
    %p92 = scmp.eq.s32.totalorder %s8, 1
    %p93 = por %p91, %p92
    %p94 = scmp.ne.s32.totalorder %s86, %s89
    %p95 = scmp.eq.s32.totalorder %s8, 0
    %p96 = por %p94, %p95
    %p97 = scmp.ne.s32.totalorder %s86, %s89
    %p98 = scmp.eq.s32.totalorder %s13, 1
    %p99 = por %p97, %p98
    %p100 = scmp.ne.s32.totalorder %s89, %s90
    %p101 = scmp.eq.s32.totalorder %s13, 0
    %p102 = por %p100, %p101
    %p103 = scmp.ne.s32.totalorder %s89, %s90
    %p104 = scmp.eq.s32.totalorder %s14, 1
    %p105 = por %p103, %p104
    %p107 = scmp.ne.s32.totalorder %s90, %s106
    %p108 = scmp.eq.s32.totalorder %s14, 0
    %p109 = por %p107, %p108
    %p110 = scmp.le.s32.totalorder 1, %s8
    %p111 = scmp.lt.s32.totalorder %s8, 3
    %p112 = pnand %p110, %p111
    %p113 = pneg %p112
    // Predicated region
    $region9: #{tpu_custom_call.1} parent=5 // pred_check
      _
    $region10: #{tpu_custom_call.1} parent=5 // pred_check_branch
      %115 = sbr.rel (%p112) target = $region12
    $region11: #{tpu_custom_call.1} parent=5 // pred_region
      %s116 = ssub.s32 %s8, 1
    $region12: #{tpu_custom_call.1} parent=5 // pred_fallthru
      _
    %p117 = scmp.lt.s32.totalorder %s8, 2
    // Predicated region
    $region13: #{tpu_custom_call.1} parent=5 // pred_check
      %p118 = pneg %p117
    $region14: #{tpu_custom_call.1} parent=5 // pred_check_branch
      %120 = sbr.rel (%p118) target = $region16
    $region15: #{tpu_custom_call.1} parent=5 // pred_region
      // Predicated region
      $region17: #{tpu_custom_call.1} parent=15 // pred_check
        %p121 = pneg %p40
      $region18: #{tpu_custom_call.1} parent=15 // pred_check_branch
        %123 = sbr.rel (%p121) target = $region20
      $region19: #{tpu_custom_call.1} parent=15 // pred_region
        %p124 = scmp.lt.s32.totalorder %s15, 1
        %s125 = scalar_select %p124, %s15, 1
        %s126 = smul.addr %s125, 8
        %s127 = scalar_lea.vmem %s0, %s126
      $region20: #{tpu_custom_call.1} parent=15 // pred_fallthru
        _
      // Predicated region
      $region21: #{tpu_custom_call.1} parent=15 // pred_check
        %p128 = pneg %p68
      $region22: #{tpu_custom_call.1} parent=15 // pred_check_branch
        %130 = sbr.rel (%p128) target = $region24
      $region23: #{tpu_custom_call.1} parent=15 // pred_region
        %p131 = scmp.lt.s32.totalorder %s15, 1
        %s132 = scalar_select %p131, %s15, 1
        %p133 = scmp.lt.s32.totalorder %s16, 0
        %s134 = scalar_select %p133, %s16, 0
        %s135 = smul.addr %s132, 2
        %s136 = sadd.s32 %s134, %s135
        %s137 = smul.addr %s136, 8
        %s138 = scalar_lea.vmem %s1, %s137
      $region24: #{tpu_custom_call.1} parent=15 // pred_fallthru
        _
    $region16: #{tpu_custom_call.1} parent=5 // pred_fallthru
      _
    %p139 = scmp.le.s32.totalorder 1, %s8
    %p140 = scmp.lt.s32.totalorder %s8, 3
    %p141 = pnand %p139, %p140
    %p142 = pneg %p141
    // Predicated region
    $region25: #{tpu_custom_call.1} parent=5 // pred_check
      _
    $region26: #{tpu_custom_call.1} parent=5 // pred_check_branch
      %144 = sbr.rel (%p141) target = $region28
    $region27: #{tpu_custom_call.1} parent=5 // pred_region
      %s145 = ssub.s32 %s8, 1
      %p146 = scmp.lt.s32.totalorder %s17, 1
      %s147 = scalar_select %p146, %s17, 1
      %s148 = smul.addr %s147, 8
      %s149 = scalar_lea.vmem %s0, %s148
      %p150 = pneg %p46
      %p151 = pneg %p43
      %p152 = scmp.lt.s32.totalorder %s17, 1
      %s153 = scalar_select %p152, %s17, 1
      %p154 = scmp.lt.s32.totalorder %s18, 0
      %s155 = scalar_select %p154, %s18, 0
      %s156 = smul.addr %s153, 2
      %s157 = sadd.s32 %s155, %s156
      %s158 = smul.addr %s157, 8
      %s159 = scalar_lea.vmem %s1, %s158
      %p160 = pneg %p74
      %p161 = pneg %p71
      %p162 = pneg %p102
      %p163 = pneg %p99
      %p164 = scmp.lt.s32.totalorder %s17, 1
      %s165 = scalar_select %p164, %s17, 1
      %p166 = scmp.lt.s32.totalorder %s18, 0
      %s167 = scalar_select %p166, %s18, 0
      %s168 = sadd.s32 %s167, %s165
      %s169 = smul.addr %s168, 8
      %s170 = scalar_lea.vmem %s2, %s169
      %p171 = scmp.lt.s32.totalorder %s17, 1
      %s172 = scalar_select %p171, %s17, 1
      %s173 = smul.addr %s172, 8
      %s174 = scalar_lea.vmem %s0, %s173
      %p175 = scmp.lt.s32.totalorder %s17, 1
      %s176 = scalar_select %p175, %s17, 1
      %p177 = scmp.lt.s32.totalorder %s18, 0
      %s178 = scalar_select %p177, %s18, 0
      %s179 = smul.addr %s176, 2
      %s180 = sadd.s32 %s178, %s179
      %s181 = smul.addr %s180, 8
      %s182 = scalar_lea.vmem %s1, %s181
      %p183 = scmp.lt.s32.totalorder %s17, 1
      %s184 = scalar_select %p183, %s17, 1
      %p185 = scmp.lt.s32.totalorder %s18, 0
      %s186 = scalar_select %p185, %s18, 0
      %s187 = sadd.s32 %s186, %s184
      %s188 = smul.addr %s187, 8
      %s189 = scalar_lea.vmem %s2, %s188
      %p190 = scmp.eq.s32.totalorder %s18, 0
      // Predicated region
      $region29: #{tpu_custom_call.1} parent=27 // pred_check
        %p191 = pneg %p190
      $region30: #{tpu_custom_call.1} parent=27 // pred_check_branch
        %193 = sbr.rel (%p191) target = $region32
      $region31: #{tpu_custom_call.1} parent=27 // pred_region
        %v194 = vlaneseq
        %v195 = vand.u32 %v194, 127
        %v196 = vld [vmem:[%s174] sm:$0x1f]
        %197 = vset.pattern.permute.xlu0 0
        %198 = vperm.xlu0 %197, %v196
        %v199 = vpop.permute.xlu0 %198
        %vm200 = vcmp.eq.s32.totalorder %v195, %v199
        %v201 = vsel %vm200, 1, 0
        %v202 = vcvt.s32.f32 %v201
        %vm203 = vcmask 69632
        %204 = vst.msk [vmem:[#allocation2] sm:$0x1f] %vm203, %v202
      $region32: #{tpu_custom_call.1} parent=27 // pred_fallthru
        _
      %v205 = vld [vmem:[#allocation2] sm:$0x1f]
      %v206 = vld [vmem:[%s182] sm:$0xff]
      %v207 = vld [vmem:[%s182 + $0x8] sm:$0x1]
      %vm208 = vcmask 72704
      %v210 = vsel %vm208, %v205, 0
      %vm212 = vcmask 1040384
      %v214 = vsel %vm212, %v207, 0
      %216 = vmatprep.subr.mxu0 0.0
      %v217 = vand.u32 %v206, 4294901760
      %218 = vmatpush1.msra.mxu0 %v217
      %219 = vmatprep.subr.mxu0 0.0
      %v220 = vand.u32 %v214, 4294901760
      %221 = vmatpush1.msra.mxu0 %v220
      %222 = vmatprep.subr.mxu0 0.0
      %223 = vmatpush1.msra.mxu0 0.0
      %224 = vmatprep.subr.mxu0 0.0
      %225 = vmatpush1.msra.mxu0 0.0
      %226 = vmatprep.subr.mxu0 0.0
      %227 = vmatpush1.msra.mxu0 0.0
      %228 = vmatprep.subr.mxu0 0.0
      %229 = vmatpush1.msra.mxu0 0.0
      %230 = vmatprep.subr.mxu0 0.0
      %231 = vmatpush1.msra.mxu0 0.0
      %232 = vmatprep.subr.mxu0 0.0
      %233 = vmatpush1.msra.mxu0 0.0
      %234 = vmatprep.subr.mxu0 0.0
      %235 = vmatpush1.msra.mxu0 0.0
      %236 = vmatprep.subr.mxu0 0.0
      %237 = vmatpush1.msra.mxu0 0.0
      %238 = vmatprep.subr.mxu0 0.0
      %239 = vmatpush1.msra.mxu0 0.0
      %240 = vmatprep.subr.mxu0 0.0
      %241 = vmatpush1.msra.mxu0 0.0
      %242 = vmatprep.subr.mxu0 0.0
      %243 = vmatpush1.msra.mxu0 0.0
      %244 = vmatprep.subr.mxu0 0.0
      %245 = vmatpush1.msra.mxu0 0.0
      %246 = vmatprep.subr.mxu0 0.0
      %247 = vmatpush1.msra.mxu0 0.0
      %248 = vmatprep.subr.mxu0 0.0
      %249 = vmatpush1.msra.mxu0 0.0
      %250 = vmatprep.subr.mxu0 0.0
      %251 = vmatpush1.msra.mxu0 0.0
      %252 = vmatprep.subr.mxu0 0.0
      %253 = vmatpush1.msra.mxu0 0.0
      %254 = vmatprep.subr.mxu0 0.0
      %255 = vmatpush1.msra.mxu0 0.0
      %256 = vmatprep.subr.mxu0 0.0
      %257 = vmatpush1.msra.mxu0 0.0
      %258 = vmatprep.subr.mxu0 0.0
      %259 = vmatpush1.msra.mxu0 0.0
      %260 = vmatprep.subr.mxu0 0.0
      %261 = vmatpush1.msra.mxu0 0.0
      %262 = vmatprep.subr.mxu0 0.0
      %263 = vmatpush1.msra.mxu0 0.0
      %264 = vmatprep.subr.mxu0 0.0
      %265 = vmatpush1.msra.mxu0 0.0
      %266 = vmatprep.subr.mxu0 0.0
      %267 = vmatpush1.msra.mxu0 0.0
      %268 = vmatprep.subr.mxu0 0.0
      %269 = vmatpush1.msra.mxu0 0.0
      %270 = vmatprep.subr.mxu0 0.0
      %271 = vmatpush1.msra.mxu0 0.0
      %272 = vmatprep.subr.mxu0 0.0
      %273 = vmatpush1.msra.mxu0 0.0
      %274 = vmatprep.subr.mxu0 0.0
      %275 = vmatpush1.msra.mxu0 0.0
      %276 = vmatprep.subr.mxu0 0.0
      %277 = vmatpush1.msra.mxu0 0.0
      %278 = vmatprep.subr.mxu0 0.0
      %279 = vmatpush1.msra.mxu0 0.0
      %280 = vmatprep.subr.mxu0 0.0
      %281 = vmatpush1.msra.mxu0 0.0
      %282 = vmatprep.mubr.f32.mxu0 0.0
      %v283 = vand.u32 %v210, 4294901760
      %v284 = vsub.f32 %v210, %v283
      %v285 = vand.u32 %v284, 4294901760
      %v286 = vsub.f32 %v284, %v285
      %v287 = vand.u32 %v286, 4294901760
      %288 = vmatmul.mubr.f32.gmra.mrb[0].mxu0 %v287
      %v289 = vpop.f32.mrb[0].mxu0
      %v290 = vadd.f32 0.0, %v289
      %v291 = vpop.f32.mrb[0].mxu0
      %292 = vdwg.mxu0
      %293 = vmatprep.subr.mxu0 0.0
      %v294 = vand.u32 %v206, 4294901760
      %v295 = vsub.f32 %v206, %v294
      %v296 = vand.u32 %v295, 4294901760
      %v297 = vsub.f32 %v295, %v296
      %v298 = vand.u32 %v297, 4294901760
      %299 = vmatpush1.msra.mxu0 %v298
      %300 = vmatprep.subr.mxu0 0.0
      %v301 = vand.u32 %v214, 4294901760
      %v302 = vsub.f32 %v214, %v301
      %v303 = vand.u32 %v302, 4294901760
      %v304 = vsub.f32 %v302, %v303
      %v305 = vand.u32 %v304, 4294901760
      %306 = vmatpush1.msra.mxu0 %v305
      %307 = vmatprep.subr.mxu0 0.0
      %308 = vmatpush1.msra.mxu0 0.0
      %309 = vmatprep.subr.mxu0 0.0
      %310 = vmatpush1.msra.mxu0 0.0
      %311 = vmatprep.subr.mxu0 0.0
      %312 = vmatpush1.msra.mxu0 0.0
      %313 = vmatprep.subr.mxu0 0.0
      %314 = vmatpush1.msra.mxu0 0.0
      %315 = vmatprep.subr.mxu0 0.0
      %316 = vmatpush1.msra.mxu0 0.0
      %317 = vmatprep.subr.mxu0 0.0
      %318 = vmatpush1.msra.mxu0 0.0
      %319 = vmatprep.subr.mxu0 0.0
      %320 = vmatpush1.msra.mxu0 0.0
      %321 = vmatprep.subr.mxu0 0.0
      %322 = vmatpush1.msra.mxu0 0.0
      %323 = vmatprep.subr.mxu0 0.0
      %324 = vmatpush1.msra.mxu0 0.0
      %325 = vmatprep.subr.mxu0 0.0
      %326 = vmatpush1.msra.mxu0 0.0
      %327 = vmatprep.subr.mxu0 0.0
      %328 = vmatpush1.msra.mxu0 0.0
      %329 = vmatprep.subr.mxu0 0.0
      %330 = vmatpush1.msra.mxu0 0.0
      %331 = vmatprep.subr.mxu0 0.0
      %332 = vmatpush1.msra.mxu0 0.0
      %333 = vmatprep.subr.mxu0 0.0
      %334 = vmatpush1.msra.mxu0 0.0
      %335 = vmatprep.subr.mxu0 0.0
      %336 = vmatpush1.msra.mxu0 0.0
      %337 = vmatprep.subr.mxu0 0.0
      %338 = vmatpush1.msra.mxu0 0.0
      %339 = vmatprep.subr.mxu0 0.0
      %340 = vmatpush1.msra.mxu0 0.0
      %341 = vmatprep.subr.mxu0 0.0
      %342 = vmatpush1.msra.mxu0 0.0
      %343 = vmatprep.subr.mxu0 0.0
      %344 = vmatpush1.msra.mxu0 0.0
      %345 = vmatprep.subr.mxu0 0.0
      %346 = vmatpush1.msra.mxu0 0.0
      %347 = vmatprep.subr.mxu0 0.0
      %348 = vmatpush1.msra.mxu0 0.0
      %349 = vmatprep.subr.mxu0 0.0
      %350 = vmatpush1.msra.mxu0 0.0
      %351 = vmatprep.subr.mxu0 0.0
      %352 = vmatpush1.msra.mxu0 0.0
      %353 = vmatprep.subr.mxu0 0.0
      %354 = vmatpush1.msra.mxu0 0.0
      %355 = vmatprep.subr.mxu0 0.0
      %356 = vmatpush1.msra.mxu0 0.0
      %357 = vmatprep.subr.mxu0 0.0
      %358 = vmatpush1.msra.mxu0 0.0
      %359 = vmatprep.subr.mxu0 0.0
      %360 = vmatpush1.msra.mxu0 0.0
      %361 = vmatprep.subr.mxu0 0.0
      %362 = vmatpush1.msra.mxu0 0.0
      %363 = vmatprep.subr.mxu0 0.0
      %364 = vmatpush1.msra.mxu0 0.0
      %365 = vmatprep.subr.mxu0 0.0
      %366 = vmatpush1.msra.mxu0 0.0
      %367 = vmatprep.mubr.f32.mxu0 0.0
      %v368 = vand.u32 %v210, 4294901760
      %369 = vmatmul.mubr.f32.gmra.mrb[0].mxu0 %v368
      %v370 = vpop.f32.mrb[0].mxu0
      %v371 = vadd.f32 %v290, %v370
      %v372 = vpop.f32.mrb[0].mxu0
      %373 = vdwg.mxu0
      %374 = vmatprep.subr.mxu0 0.0
      %v375 = vand.u32 %v206, 4294901760
      %v376 = vsub.f32 %v206, %v375
      %377 = vmatpush1.msra.mxu0 %v376
      %378 = vmatprep.subr.mxu0 0.0
      %v379 = vand.u32 %v214, 4294901760
      %v380 = vsub.f32 %v214, %v379
      %381 = vmatpush1.msra.mxu0 %v380
      %382 = vmatprep.subr.mxu0 0.0
      %383 = vmatpush1.msra.mxu0 0.0
      %384 = vmatprep.subr.mxu0 0.0
      %385 = vmatpush1.msra.mxu0 0.0
      %386 = vmatprep.subr.mxu0 0.0
      %387 = vmatpush1.msra.mxu0 0.0
      %388 = vmatprep.subr.mxu0 0.0
      %389 = vmatpush1.msra.mxu0 0.0
      %390 = vmatprep.subr.mxu0 0.0
      %391 = vmatpush1.msra.mxu0 0.0
      %392 = vmatprep.subr.mxu0 0.0
      %393 = vmatpush1.msra.mxu0 0.0
      %394 = vmatprep.subr.mxu0 0.0
      %395 = vmatpush1.msra.mxu0 0.0
      %396 = vmatprep.subr.mxu0 0.0
      %397 = vmatpush1.msra.mxu0 0.0
      %398 = vmatprep.subr.mxu0 0.0
      %399 = vmatpush1.msra.mxu0 0.0
      %400 = vmatprep.subr.mxu0 0.0
      %401 = vmatpush1.msra.mxu0 0.0
      %402 = vmatprep.subr.mxu0 0.0
      %403 = vmatpush1.msra.mxu0 0.0
      %404 = vmatprep.subr.mxu0 0.0
      %405 = vmatpush1.msra.mxu0 0.0
      %406 = vmatprep.subr.mxu0 0.0
      %407 = vmatpush1.msra.mxu0 0.0
      %408 = vmatprep.subr.mxu0 0.0
      %409 = vmatpush1.msra.mxu0 0.0
      %410 = vmatprep.subr.mxu0 0.0
      %411 = vmatpush1.msra.mxu0 0.0
      %412 = vmatprep.subr.mxu0 0.0
      %413 = vmatpush1.msra.mxu0 0.0
      %414 = vmatprep.subr.mxu0 0.0
      %415 = vmatpush1.msra.mxu0 0.0
      %416 = vmatprep.subr.mxu0 0.0
      %417 = vmatpush1.msra.mxu0 0.0
      %418 = vmatprep.subr.mxu0 0.0
      %419 = vmatpush1.msra.mxu0 0.0
      %420 = vmatprep.subr.mxu0 0.0
      %421 = vmatpush1.msra.mxu0 0.0
      %422 = vmatprep.subr.mxu0 0.0
      %423 = vmatpush1.msra.mxu0 0.0
      %424 = vmatprep.subr.mxu0 0.0
      %425 = vmatpush1.msra.mxu0 0.0
      %426 = vmatprep.subr.mxu0 0.0
      %427 = vmatpush1.msra.mxu0 0.0
      %428 = vmatprep.subr.mxu0 0.0
      %429 = vmatpush1.msra.mxu0 0.0
      %430 = vmatprep.subr.mxu0 0.0
      %431 = vmatpush1.msra.mxu0 0.0
      %432 = vmatprep.subr.mxu0 0.0
      %433 = vmatpush1.msra.mxu0 0.0
      %434 = vmatprep.subr.mxu0 0.0
      %435 = vmatpush1.msra.mxu0 0.0
      %436 = vmatprep.subr.mxu0 0.0
      %437 = vmatpush1.msra.mxu0 0.0
      %438 = vmatprep.subr.mxu0 0.0
      %439 = vmatpush1.msra.mxu0 0.0
      %440 = vmatprep.subr.mxu0 0.0
      %441 = vmatpush1.msra.mxu0 0.0
      %442 = vmatprep.mubr.f32.mxu0 0.0
      %v443 = vand.u32 %v210, 4294901760
      %v444 = vsub.f32 %v210, %v443
      %445 = vmatmul.mubr.f32.gmra.mrb[0].mxu0 %v444
      %v446 = vpop.f32.mrb[0].mxu0
      %v447 = vadd.f32 %v371, %v446
      %v448 = vpop.f32.mrb[0].mxu0
      %449 = vdwg.mxu0
      %450 = vmatprep.subr.mxu0 0.0
      %v451 = vand.u32 %v206, 4294901760
      %452 = vmatpush1.msra.mxu0 %v451
      %453 = vmatprep.subr.mxu0 0.0
      %v454 = vand.u32 %v214, 4294901760
      %455 = vmatpush1.msra.mxu0 %v454
      %456 = vmatprep.subr.mxu0 0.0
      %457 = vmatpush1.msra.mxu0 0.0
      %458 = vmatprep.subr.mxu0 0.0
      %459 = vmatpush1.msra.mxu0 0.0
      %460 = vmatprep.subr.mxu0 0.0
      %461 = vmatpush1.msra.mxu0 0.0
      %462 = vmatprep.subr.mxu0 0.0
      %463 = vmatpush1.msra.mxu0 0.0
      %464 = vmatprep.subr.mxu0 0.0
      %465 = vmatpush1.msra.mxu0 0.0
      %466 = vmatprep.subr.mxu0 0.0
      %467 = vmatpush1.msra.mxu0 0.0
      %468 = vmatprep.subr.mxu0 0.0
      %469 = vmatpush1.msra.mxu0 0.0
      %470 = vmatprep.subr.mxu0 0.0
      %471 = vmatpush1.msra.mxu0 0.0
      %472 = vmatprep.subr.mxu0 0.0
      %473 = vmatpush1.msra.mxu0 0.0
      %474 = vmatprep.subr.mxu0 0.0
      %475 = vmatpush1.msra.mxu0 0.0
      %476 = vmatprep.subr.mxu0 0.0
      %477 = vmatpush1.msra.mxu0 0.0
      %478 = vmatprep.subr.mxu0 0.0
      %479 = vmatpush1.msra.mxu0 0.0
      %480 = vmatprep.subr.mxu0 0.0
      %481 = vmatpush1.msra.mxu0 0.0
      %482 = vmatprep.subr.mxu0 0.0
      %483 = vmatpush1.msra.mxu0 0.0
      %484 = vmatprep.subr.mxu0 0.0
      %485 = vmatpush1.msra.mxu0 0.0
      %486 = vmatprep.subr.mxu0 0.0
      %487 = vmatpush1.msra.mxu0 0.0
      %488 = vmatprep.subr.mxu0 0.0
      %489 = vmatpush1.msra.mxu0 0.0
      %490 = vmatprep.subr.mxu0 0.0
      %491 = vmatpush1.msra.mxu0 0.0
      %492 = vmatprep.subr.mxu0 0.0
      %493 = vmatpush1.msra.mxu0 0.0
      %494 = vmatprep.subr.mxu0 0.0
      %495 = vmatpush1.msra.mxu0 0.0
      %496 = vmatprep.subr.mxu0 0.0
      %497 = vmatpush1.msra.mxu0 0.0
      %498 = vmatprep.subr.mxu0 0.0
      %499 = vmatpush1.msra.mxu0 0.0
      %500 = vmatprep.subr.mxu0 0.0
      %501 = vmatpush1.msra.mxu0 0.0
      %502 = vmatprep.subr.mxu0 0.0
      %503 = vmatpush1.msra.mxu0 0.0
      %504 = vmatprep.subr.mxu0 0.0
      %505 = vmatpush1.msra.mxu0 0.0
      %506 = vmatprep.subr.mxu0 0.0
      %507 = vmatpush1.msra.mxu0 0.0
      %508 = vmatprep.subr.mxu0 0.0
      %509 = vmatpush1.msra.mxu0 0.0
      %510 = vmatprep.subr.mxu0 0.0
      %511 = vmatpush1.msra.mxu0 0.0
      %512 = vmatprep.subr.mxu0 0.0
      %513 = vmatpush1.msra.mxu0 0.0
      %514 = vmatprep.subr.mxu0 0.0
      %515 = vmatpush1.msra.mxu0 0.0
      %516 = vmatprep.mubr.f32.mxu0 0.0
      %v517 = vand.u32 %v210, 4294901760
      %v518 = vsub.f32 %v210, %v517
      %v519 = vand.u32 %v518, 4294901760
      %520 = vmatmul.mubr.f32.gmra.mrb[0].mxu0 %v519
      %v521 = vpop.f32.mrb[0].mxu0
      %v522 = vadd.f32 %v447, %v521
      %v523 = vpop.f32.mrb[0].mxu0
      %524 = vdwg.mxu0
      %525 = vmatprep.subr.mxu0 0.0
      %v526 = vand.u32 %v206, 4294901760
      %v527 = vsub.f32 %v206, %v526
      %v528 = vand.u32 %v527, 4294901760
      %529 = vmatpush1.msra.mxu0 %v528
      %530 = vmatprep.subr.mxu0 0.0
      %v531 = vand.u32 %v214, 4294901760
      %v532 = vsub.f32 %v214, %v531
      %v533 = vand.u32 %v532, 4294901760
      %534 = vmatpush1.msra.mxu0 %v533
      %535 = vmatprep.subr.mxu0 0.0
      %536 = vmatpush1.msra.mxu0 0.0
      %537 = vmatprep.subr.mxu0 0.0
      %538 = vmatpush1.msra.mxu0 0.0
      %539 = vmatprep.subr.mxu0 0.0
      %540 = vmatpush1.msra.mxu0 0.0
      %541 = vmatprep.subr.mxu0 0.0
      %542 = vmatpush1.msra.mxu0 0.0
      %543 = vmatprep.subr.mxu0 0.0
      %544 = vmatpush1.msra.mxu0 0.0
      %545 = vmatprep.subr.mxu0 0.0
      %546 = vmatpush1.msra.mxu0 0.0
      %547 = vmatprep.subr.mxu0 0.0
      %548 = vmatpush1.msra.mxu0 0.0
      %549 = vmatprep.subr.mxu0 0.0
      %550 = vmatpush1.msra.mxu0 0.0
      %551 = vmatprep.subr.mxu0 0.0
      %552 = vmatpush1.msra.mxu0 0.0
      %553 = vmatprep.subr.mxu0 0.0
      %554 = vmatpush1.msra.mxu0 0.0
      %555 = vmatprep.subr.mxu0 0.0
      %556 = vmatpush1.msra.mxu0 0.0
      %557 = vmatprep.subr.mxu0 0.0
      %558 = vmatpush1.msra.mxu0 0.0
      %559 = vmatprep.subr.mxu0 0.0
      %560 = vmatpush1.msra.mxu0 0.0
      %561 = vmatprep.subr.mxu0 0.0
      %562 = vmatpush1.msra.mxu0 0.0
      %563 = vmatprep.subr.mxu0 0.0
      %564 = vmatpush1.msra.mxu0 0.0
      %565 = vmatprep.subr.mxu0 0.0
      %566 = vmatpush1.msra.mxu0 0.0
      %567 = vmatprep.subr.mxu0 0.0
      %568 = vmatpush1.msra.mxu0 0.0
      %569 = vmatprep.subr.mxu0 0.0
      %570 = vmatpush1.msra.mxu0 0.0
      %571 = vmatprep.subr.mxu0 0.0
      %572 = vmatpush1.msra.mxu0 0.0
      %573 = vmatprep.subr.mxu0 0.0
      %574 = vmatpush1.msra.mxu0 0.0
      %575 = vmatprep.subr.mxu0 0.0
      %576 = vmatpush1.msra.mxu0 0.0
      %577 = vmatprep.subr.mxu0 0.0
      %578 = vmatpush1.msra.mxu0 0.0
      %579 = vmatprep.subr.mxu0 0.0
      %580 = vmatpush1.msra.mxu0 0.0
      %581 = vmatprep.subr.mxu0 0.0
      %582 = vmatpush1.msra.mxu0 0.0
      %583 = vmatprep.subr.mxu0 0.0
      %584 = vmatpush1.msra.mxu0 0.0
      %585 = vmatprep.subr.mxu0 0.0
      %586 = vmatpush1.msra.mxu0 0.0
      %587 = vmatprep.subr.mxu0 0.0
      %588 = vmatpush1.msra.mxu0 0.0
      %589 = vmatprep.subr.mxu0 0.0
      %590 = vmatpush1.msra.mxu0 0.0
      %591 = vmatprep.subr.mxu0 0.0
      %592 = vmatpush1.msra.mxu0 0.0
      %593 = vmatprep.subr.mxu0 0.0
      %594 = vmatpush1.msra.mxu0 0.0
      %595 = vmatprep.mubr.f32.mxu0 0.0
      %v596 = vand.u32 %v210, 4294901760
      %597 = vmatmul.mubr.f32.gmra.mrb[0].mxu0 %v596
      %v598 = vpop.f32.mrb[0].mxu0
      %v599 = vadd.f32 %v522, %v598
      %v600 = vpop.f32.mrb[0].mxu0
      %601 = vdwg.mxu0
      %602 = vmatprep.subr.mxu0 0.0
      %v603 = vand.u32 %v206, 4294901760
      %604 = vmatpush1.msra.mxu0 %v603
      %605 = vmatprep.subr.mxu0 0.0
      %v606 = vand.u32 %v214, 4294901760
      %607 = vmatpush1.msra.mxu0 %v606
      %608 = vmatprep.subr.mxu0 0.0
      %609 = vmatpush1.msra.mxu0 0.0
      %610 = vmatprep.subr.mxu0 0.0
      %611 = vmatpush1.msra.mxu0 0.0
      %612 = vmatprep.subr.mxu0 0.0
      %613 = vmatpush1.msra.mxu0 0.0
      %614 = vmatprep.subr.mxu0 0.0
      %615 = vmatpush1.msra.mxu0 0.0
      %616 = vmatprep.subr.mxu0 0.0
      %617 = vmatpush1.msra.mxu0 0.0
      %618 = vmatprep.subr.mxu0 0.0
      %619 = vmatpush1.msra.mxu0 0.0
      %620 = vmatprep.subr.mxu0 0.0
      %621 = vmatpush1.msra.mxu0 0.0
      %622 = vmatprep.subr.mxu0 0.0
      %623 = vmatpush1.msra.mxu0 0.0
      %624 = vmatprep.subr.mxu0 0.0
      %625 = vmatpush1.msra.mxu0 0.0
      %626 = vmatprep.subr.mxu0 0.0
      %627 = vmatpush1.msra.mxu0 0.0
      %628 = vmatprep.subr.mxu0 0.0
      %629 = vmatpush1.msra.mxu0 0.0
      %630 = vmatprep.subr.mxu0 0.0
      %631 = vmatpush1.msra.mxu0 0.0
      %632 = vmatprep.subr.mxu0 0.0
      %633 = vmatpush1.msra.mxu0 0.0
      %634 = vmatprep.subr.mxu0 0.0
      %635 = vmatpush1.msra.mxu0 0.0
      %636 = vmatprep.subr.mxu0 0.0
      %637 = vmatpush1.msra.mxu0 0.0
      %638 = vmatprep.subr.mxu0 0.0
      %639 = vmatpush1.msra.mxu0 0.0
      %640 = vmatprep.subr.mxu0 0.0
      %641 = vmatpush1.msra.mxu0 0.0
      %642 = vmatprep.subr.mxu0 0.0
      %643 = vmatpush1.msra.mxu0 0.0
      %644 = vmatprep.subr.mxu0 0.0
      %645 = vmatpush1.msra.mxu0 0.0
      %646 = vmatprep.subr.mxu0 0.0
      %647 = vmatpush1.msra.mxu0 0.0
      %648 = vmatprep.subr.mxu0 0.0
      %649 = vmatpush1.msra.mxu0 0.0
      %650 = vmatprep.subr.mxu0 0.0
      %651 = vmatpush1.msra.mxu0 0.0
      %652 = vmatprep.subr.mxu0 0.0
      %653 = vmatpush1.msra.mxu0 0.0
      %654 = vmatprep.subr.mxu0 0.0
      %655 = vmatpush1.msra.mxu0 0.0
      %656 = vmatprep.subr.mxu0 0.0
      %657 = vmatpush1.msra.mxu0 0.0
      %658 = vmatprep.subr.mxu0 0.0
      %659 = vmatpush1.msra.mxu0 0.0
      %660 = vmatprep.subr.mxu0 0.0
      %661 = vmatpush1.msra.mxu0 0.0
      %662 = vmatprep.subr.mxu0 0.0
      %663 = vmatpush1.msra.mxu0 0.0
      %664 = vmatprep.subr.mxu0 0.0
      %665 = vmatpush1.msra.mxu0 0.0
      %666 = vmatprep.subr.mxu0 0.0
      %667 = vmatpush1.msra.mxu0 0.0
      %668 = vmatprep.mubr.f32.mxu0 0.0
      %v669 = vand.u32 %v210, 4294901760
      %670 = vmatmul.mubr.f32.gmra.mrb[0].mxu0 %v669
      %v671 = vpop.f32.mrb[0].mxu0
      %v672 = vadd.f32 %v599, %v671
      %v673 = vpop.f32.mrb[0].mxu0
      %674 = vdwg.mxu0
      %vm675 = vcmask 258048
      %676 = vst.msk [vmem:[%s189] sm:$0x1f] %vm675, %v672
      %p677 = scmp.lt.s32.totalorder %s17, 1
      %s678 = scalar_select %p677, %s17, 1
      %p679 = scmp.lt.s32.totalorder %s18, 0
      %s680 = scalar_select %p679, %s18, 0
      %s681 = sadd.s32 %s680, %s678
      %s682 = smul.addr %s681, 8
      %s683 = scalar_lea.vmem %s2, %s682
      // Predicated region
      $region33: #{tpu_custom_call.1} parent=27 // pred_check
        %p684 = pneg %p99
      $region34: #{tpu_custom_call.1} parent=27 // pred_check_branch
        %686 = sbr.rel (%p684) target = $region36
      $region35: #{tpu_custom_call.1} parent=27 // pred_region
        _
      $region36: #{tpu_custom_call.1} parent=27 // pred_fallthru
        _
    $region28: #{tpu_custom_call.1} parent=5 // pred_fallthru
      _
    %p687 = scmp.le.s32.totalorder 2, %s8
    // Predicated region
    $region37: #{tpu_custom_call.1} parent=5 // pred_check
      %p688 = pneg %p687
    $region38: #{tpu_custom_call.1} parent=5 // pred_check_branch
      %690 = sbr.rel (%p688) target = $region40
    $region39: #{tpu_custom_call.1} parent=5 // pred_region
      %s691 = ssub.s32 %s8, 2
      // Predicated region
      $region41: #{tpu_custom_call.1} parent=39 // pred_check
        %p692 = pneg %p105
      $region42: #{tpu_custom_call.1} parent=39 // pred_check_branch
        %694 = sbr.rel (%p692) target = $region44
      $region43: #{tpu_custom_call.1} parent=39 // pred_region
        %p695 = scmp.lt.s32.totalorder %s19, 1
        %s696 = scalar_select %p695, %s19, 1
        %p697 = scmp.lt.s32.totalorder %s20, 0
        %s698 = scalar_select %p697, %s20, 0
        %s699 = sadd.s32 %s698, %s696
        %s700 = smul.addr %s699, 8
        %s701 = scalar_lea.vmem %s2, %s700
      $region44: #{tpu_custom_call.1} parent=39 // pred_fallthru
        _
    $region40: #{tpu_custom_call.1} parent=5 // pred_fallthru
      _
  $region6: #{tpu_custom_call.1} parent=0 // loop_footer
    %s12 = sadd.s32 1, %s8
  $region7: #{tpu_custom_call.1} parent=0 // loop_footer_branch
    %7 = sbr.rel target = $region3
  $region8: #{tpu_custom_call.1} parent=0 // loop_exit
    _

</llo_original>
